<compile_context>
chip_gen: v7x
topology: tpu7x:2x2x1
jax: 0.10.0
libtpu: 0.0.40
codegen_flags: <defaults>
</compile_context>

<pallas_src>
import functools

import jax
import jax.numpy as jnp
from jax.experimental import pallas as pl
from jax.experimental.pallas import tpu as pltpu


def _round_up(x: int, m: int) -> int:
    return ((x + m - 1) // m) * m


def _critic_kernel(x_ref, w1p_ref, b1_ref, w2h_ref, w2xa_ref, b2_ref,
                   w3t_ref, b3t_ref, out_ref):
    x = x_ref[...]                                   # (tm, input+action)

    # ---- fc1 + relu (MXU). Action rows of w1p are zero, so x@w1p == state@W1.
    h1 = jnp.dot(x, w1p_ref[...], preferred_element_type=jnp.float32) + b1_ref[...]
    h1 = jnp.maximum(h1, 0.0)

    # ---- fc2 + relu on concat([h1, actions]):
    #      == h1 @ W2[:fc1] + actions @ W2[fc1:]  (state rows of w2xa are zero)
    h2 = (jnp.dot(h1, w2h_ref[...], preferred_element_type=jnp.float32)
          + jnp.dot(x, w2xa_ref[...], preferred_element_type=jnp.float32)
          + b2_ref[...])
    h2 = jnp.maximum(h2, 0.0)

    # ---- output layer, lane-dense: (out_size, tm) = w3t(out,fc2) · h2(tm,fc2)^T
    out = jax.lax.dot_general(w3t_ref[...], h2, (((1,), (1,)), ((), ())),
                              preferred_element_type=jnp.float32) + b3t_ref[...]
    out_ref[...] = out.astype(out_ref.dtype)


def critic_forward(state, actions, kparams, *, block_m=2048,
                   use_bf16_inputs=False):
    """state: (B, input_size), actions: (B, action_size) -> (B, output_size)."""
    w1p, b1 = kparams["w1p"], kparams["b1"]          # (in+act, fc1), (1, fc1)
    w2h, w2xa, b2 = kparams["w2h"], kparams["w2xa"], kparams["b2"]
    w3t, b3t = kparams["w3t"], kparams["b3t"]        # (out, fc2), (out, 1)

    B, input_size = state.shape
    action_size = actions.shape[1]
    in_act = input_size + action_size
    fc1 = w1p.shape[1]
    fc2 = w2h.shape[1]
    out_size = w3t.shape[0]

    assert w1p.shape == (in_act, fc1)
    assert w2h.shape == (fc1, fc2) and w2xa.shape == (in_act, fc2)
    assert b1.shape == (1, fc1) and b2.shape == (1, fc2)
    assert w3t.shape == (out_size, fc2) and b3t.shape == (out_size, 1)

    # One-time per-call pack of the two streamed inputs into a single slab.
    x = jnp.concatenate([state, actions], axis=1)
    if use_bf16_inputs:
        x = x.astype(jnp.bfloat16)                   # halves streamed HBM bytes

    # Pad batch only to the f32 sublane multiple; trailing grid blocks may be
    # ragged (Pallas masks the partial block) — no padding up to tm.
    padded_b = _round_up(B, 8)
    if padded_b != B:
        x = jnp.pad(x, ((0, padded_b - B), (0, 0)))

    # Tile selection:
    #  * tiny batches: one full-array block (block == full dims, no constraint).
    #  * larger batches: tm is a multiple of 128 (output lane dim requirement),
    #    capped at ceil(B/2) so the grid has >= 2 steps (v7x megacore), and at
    #    block_m for VMEM (lane-padded input ~1 KiB/row double-buffered).
    if padded_b <= 256:
        tm = padded_b
    else:
        block_m_eff = max(128, (block_m // 128) * 128)
        half = _round_up(pl.cdiv(padded_b, 2), 128)
        tm = min(block_m_eff, half)
    grid_m = pl.cdiv(padded_b, tm)

    def const_spec(shape):
        # Constant index_map: weights/biases DMA'd once, VMEM-resident.
        return pl.BlockSpec(shape, lambda i: (0, 0))

    out = pl.pallas_call(
        _critic_kernel,
        out_shape=jax.ShapeDtypeStruct((out_size, padded_b), jnp.float32),
        grid=(grid_m,),
        in_specs=[
            pl.BlockSpec((tm, in_act), lambda i: (i, 0)),   # packed inputs
            const_spec(w1p.shape),
            const_spec(b1.shape),
            const_spec(w2h.shape),
            const_spec(w2xa.shape),
            const_spec(b2.shape),
            const_spec(w3t.shape),
            const_spec(b3t.shape),
        ],
        out_specs=pl.BlockSpec((out_size, tm), lambda i: (0, i)),  # lane-dense
        compiler_params=pltpu.CompilerParams(
            dimension_semantics=("parallel",)),      # shards across v7x TCs
    )(x, w1p, b1, w2h, w2xa, b2, w3t, b3t)

    # (out_size, padded_b) -> (B, out_size); a reshape when out_size == 1.
    return out[:, :B].T


# --------------------------- parameters / reference ---------------------------

def init_linear(key, fan_in, fan_out):
    """Matches torch.nn.Linear's U(-1/sqrt(fan_in), 1/sqrt(fan_in)) init."""
    kw, kb = jax.random.split(key)
    bound = 1.0 / jnp.sqrt(jnp.float32(fan_in))
    w = jax.random.uniform(kw, (fan_in, fan_out), jnp.float32, -bound, bound)
    b = jax.random.uniform(kb, (fan_out,), jnp.float32, -bound, bound)
    return w, b


def make_params(key, input_size, action_size, output_size, fc1=16, fc2=16):
    """Natural (torch-layout) parameters."""
    k1, k2, k3 = jax.random.split(key, 3)
    w1, b1 = init_linear(k1, input_size, fc1)
    w2, b2 = init_linear(k2, fc1 + action_size, fc2)
    w3, b3 = init_linear(k3, fc2, output_size)
    return dict(w1=w1, b1=b1, w2=w2, b2=b2, w3=w3, b3=b3)


def pack_params(p, input_size, action_size):
    """One-time conversion to the kernel layout (zero-extended weights, etc.)."""
    fc1 = p["w1"].shape[1]
    fc2 = p["w2"].shape[1]
    out_size = p["w3"].shape[1]
    in_act = input_size + action_size
    assert p["w2"].shape[0] == fc1 + action_size
    # fc1 weights zero-extended over action rows: x @ w1p == state @ W1.
    w1p = jnp.zeros((in_act, fc1), jnp.float32).at[:input_size].set(p["w1"])
    # fc2 split: h-part over h1, action-part zero-extended over state rows.
    w2h = p["w2"][:fc1]
    w2xa = jnp.zeros((in_act, fc2), jnp.float32).at[input_size:].set(p["w2"][fc1:])
    return dict(
        w1p=w1p, b1=p["b1"].reshape(1, fc1),
        w2h=w2h, w2xa=w2xa, b2=p["b2"].reshape(1, fc2),
        w3t=p["w3"].T, b3t=p["b3"].reshape(out_size, 1))


def critic_reference(state, actions, p):
    h1 = jax.nn.relu(state @ p["w1"] + p["b1"])
    cat = jnp.concatenate([h1, actions], axis=1)
    h2 = jax.nn.relu(cat @ p["w2"] + p["b2"])
    return h2 @ p["w3"] + p["b3"]


if __name__ == "__main__":
    input_size, action_size, output_size = 24, 4, 1
    key = jax.random.PRNGKey(0)
    kp, ks, ka, ks2, ka2 = jax.random.split(key, 5)

    params = make_params(kp, input_size, action_size, output_size, fc1=16, fc2=16)
    kparams = pack_params(params, input_size, action_size)

    # Small batch: single full-array block path.
    B = 8
    state = jax.random.normal(ks, (B, input_size), jnp.float32)
    actions = jax.random.normal(ka, (B, action_size), jnp.float32)
    out = jax.block_until_ready(critic_forward(state, actions, kparams))
    ref = critic_reference(state, actions, params)
    assert out.shape == (B, output_size)
    assert jnp.allclose(out, ref, atol=1e-5, rtol=1e-5), (out, ref)

    # Larger batch: multi-step grid with a ragged trailing block.
    B2 = 300
    state2 = jax.random.normal(ks2, (B2, input_size), jnp.float32)
    actions2 = jax.random.normal(ka2, (B2, action_size), jnp.float32)
    out2 = jax.block_until_ready(
        critic_forward(state2, actions2, kparams, block_m=128))
    ref2 = critic_reference(state2, actions2, params)
    assert out2.shape == (B2, output_size)
    assert jnp.allclose(out2, ref2, atol=1e-5, rtol=1e-5)

    # Optional bf16 streaming mode (bandwidth-roofline mode, looser tolerance).
    out3 = jax.block_until_ready(
        critic_forward(state2, actions2, kparams, use_bf16_inputs=True))
    assert jnp.allclose(out3, ref2, atol=5e-2, rtol=5e-2)

    print("KERNEL_OK")
</pallas_src>

<mosaic_0001>
module attributes {stable_mosaic.version = 11 : i64} {
  func.func @_critic_kernel(%arg0: i32, %arg1: memref<8x28xf32, #tpu.memory_space<vmem>>, %arg2: memref<28x16xf32, #tpu.memory_space<vmem>>, %arg3: memref<1x16xf32, #tpu.memory_space<vmem>>, %arg4: memref<16x16xf32, #tpu.memory_space<vmem>>, %arg5: memref<28x16xf32, #tpu.memory_space<vmem>>, %arg6: memref<1x16xf32, #tpu.memory_space<vmem>>, %arg7: memref<1x16xf32, #tpu.memory_space<vmem>>, %arg8: memref<1x1xf32, #tpu.memory_space<vmem>>, %arg9: memref<1x8xf32, #tpu.memory_space<vmem>>) attributes {dimension_semantics = [#tpu.dimension_semantics<parallel>], iteration_bounds = array<i64: 1>, scalar_prefetch = 0 : i64, scratch_operands = 0 : i64, tpu.core_type = #tpu.core_type<tc>, window_params = [{transform_indices = @transform_0, window_bounds = array<i64: 8, 28>}, {pipeline_mode = #tpu.pipeline_mode<synchronous>, transform_indices = @transform_1, window_bounds = array<i64: 28, 16>}, {pipeline_mode = #tpu.pipeline_mode<synchronous>, transform_indices = @transform_2, window_bounds = array<i64: 1, 16>}, {pipeline_mode = #tpu.pipeline_mode<synchronous>, transform_indices = @transform_3, window_bounds = array<i64: 16, 16>}, {pipeline_mode = #tpu.pipeline_mode<synchronous>, transform_indices = @transform_4, window_bounds = array<i64: 28, 16>}, {pipeline_mode = #tpu.pipeline_mode<synchronous>, transform_indices = @transform_5, window_bounds = array<i64: 1, 16>}, {pipeline_mode = #tpu.pipeline_mode<synchronous>, transform_indices = @transform_6, window_bounds = array<i64: 1, 16>}, {pipeline_mode = #tpu.pipeline_mode<synchronous>, transform_indices = @transform_7, window_bounds = array<i64: 1, 1>}, {transform_indices = @transform_8, window_bounds = array<i64: 1, 8>}]} {
    %c0 = arith.constant 0 : index
    %c0_0 = arith.constant 0 : index
    %0 = vector.load %arg1[%c0, %c0_0] : memref<8x28xf32, #tpu.memory_space<vmem>>, vector<8x28xf32>
    %c0_1 = arith.constant 0 : index
    %c0_2 = arith.constant 0 : index
    %1 = vector.load %arg2[%c0_1, %c0_2] : memref<28x16xf32, #tpu.memory_space<vmem>>, vector<28x16xf32>
    %cst = arith.constant dense<0.000000e+00> : vector<8x16xf32>
    %2 = tpu.matmul %0, %1, %cst {dimension_numbers = #tpu.dot_dimension_numbers<[1], [0], [0], [1], [0, 0, 1, 1], [], []>} : vector<8x28xf32>, vector<28x16xf32>, vector<8x16xf32> -> vector<8x16xf32>
    %c0_3 = arith.constant 0 : index
    %c0_4 = arith.constant 0 : index
    %3 = vector.load %arg3[%c0_3, %c0_4] : memref<1x16xf32, #tpu.memory_space<vmem>>, vector<1x16xf32>
    %4 = vector.broadcast %3 : vector<1x16xf32> to vector<8x16xf32>
    %5 = arith.addf %2, %4 : vector<8x16xf32>
    %cst_5 = arith.constant 0.000000e+00 : f32
    %6 = vector.broadcast %cst_5 : f32 to vector<8x16xf32>
    %7 = arith.maximumf %5, %6 : vector<8x16xf32>
    %c0_6 = arith.constant 0 : index
    %c0_7 = arith.constant 0 : index
    %8 = vector.load %arg4[%c0_6, %c0_7] : memref<16x16xf32, #tpu.memory_space<vmem>>, vector<16x16xf32>
    %cst_8 = arith.constant dense<0.000000e+00> : vector<8x16xf32>
    %9 = tpu.matmul %7, %8, %cst_8 {dimension_numbers = #tpu.dot_dimension_numbers<[1], [0], [0], [1], [0, 0, 1, 1], [], []>} : vector<8x16xf32>, vector<16x16xf32>, vector<8x16xf32> -> vector<8x16xf32>
    %c0_9 = arith.constant 0 : index
    %c0_10 = arith.constant 0 : index
    %10 = vector.load %arg5[%c0_9, %c0_10] : memref<28x16xf32, #tpu.memory_space<vmem>>, vector<28x16xf32>
    %cst_11 = arith.constant dense<0.000000e+00> : vector<8x16xf32>
    %11 = tpu.matmul %0, %10, %cst_11 {dimension_numbers = #tpu.dot_dimension_numbers<[1], [0], [0], [1], [0, 0, 1, 1], [], []>} : vector<8x28xf32>, vector<28x16xf32>, vector<8x16xf32> -> vector<8x16xf32>
    %12 = arith.addf %9, %11 : vector<8x16xf32>
    %c0_12 = arith.constant 0 : index
    %c0_13 = arith.constant 0 : index
    %13 = vector.load %arg6[%c0_12, %c0_13] : memref<1x16xf32, #tpu.memory_space<vmem>>, vector<1x16xf32>
    %14 = vector.broadcast %13 : vector<1x16xf32> to vector<8x16xf32>
    %15 = arith.addf %12, %14 : vector<8x16xf32>
    %cst_14 = arith.constant 0.000000e+00 : f32
    %16 = vector.broadcast %cst_14 : f32 to vector<8x16xf32>
    %17 = arith.maximumf %15, %16 : vector<8x16xf32>
    %c0_15 = arith.constant 0 : index
    %c0_16 = arith.constant 0 : index
    %18 = vector.load %arg7[%c0_15, %c0_16] : memref<1x16xf32, #tpu.memory_space<vmem>>, vector<1x16xf32>
    %cst_17 = arith.constant dense<0.000000e+00> : vector<1x8xf32>
    %19 = tpu.matmul %18, %17, %cst_17 {dimension_numbers = #tpu.dot_dimension_numbers<[1], [1], [0], [0], [0, 0, 1, 0], [], []>} : vector<1x16xf32>, vector<8x16xf32>, vector<1x8xf32> -> vector<1x8xf32>
    %c0_18 = arith.constant 0 : index
    %c0_19 = arith.constant 0 : index
    %20 = vector.load %arg8[%c0_18, %c0_19] : memref<1x1xf32, #tpu.memory_space<vmem>>, vector<1x1xf32>
    %21 = vector.broadcast %20 : vector<1x1xf32> to vector<1x8xf32>
    %22 = arith.addf %19, %21 : vector<1x8xf32>
    %c0_20 = arith.constant 0 : index
    %c0_21 = arith.constant 0 : index
    %23 = vector.load %arg9[%c0_20, %c0_21] : memref<1x8xf32, #tpu.memory_space<vmem>>, vector<1x8xf32>
    tpu.vector_store %arg9[%c0_20, %c0_21], %22 {strides = array<i32>} : memref<1x8xf32, #tpu.memory_space<vmem>>, vector<1x8xf32>,
    return
  }
  func.func @transform_0(%arg0: i32) -> (i32, i32) {
    %c0_i32 = arith.constant 0 : i32
    %c0_i32_0 = arith.constant 0 : i32
    return %arg0, %c0_i32 : i32, i32
  }
  func.func @transform_1(%arg0: i32) -> (i32, i32) {
    %c0_i32 = arith.constant 0 : i32
    %c0_i32_0 = arith.constant 0 : i32
    %c0_i32_1 = arith.constant 0 : i32
    return %c0_i32, %c0_i32_0 : i32, i32
  }
  func.func @transform_2(%arg0: i32) -> (i32, i32) {
    %c0_i32 = arith.constant 0 : i32
    %c0_i32_0 = arith.constant 0 : i32
    %c0_i32_1 = arith.constant 0 : i32
    return %c0_i32, %c0_i32_0 : i32, i32
  }
  func.func @transform_3(%arg0: i32) -> (i32, i32) {
    %c0_i32 = arith.constant 0 : i32
    %c0_i32_0 = arith.constant 0 : i32
    %c0_i32_1 = arith.constant 0 : i32
    return %c0_i32, %c0_i32_0 : i32, i32
  }
  func.func @transform_4(%arg0: i32) -> (i32, i32) {
    %c0_i32 = arith.constant 0 : i32
    %c0_i32_0 = arith.constant 0 : i32
    %c0_i32_1 = arith.constant 0 : i32
    return %c0_i32, %c0_i32_0 : i32, i32
  }
  func.func @transform_5(%arg0: i32) -> (i32, i32) {
    %c0_i32 = arith.constant 0 : i32
    %c0_i32_0 = arith.constant 0 : i32
    %c0_i32_1 = arith.constant 0 : i32
    return %c0_i32, %c0_i32_0 : i32, i32
  }
  func.func @transform_6(%arg0: i32) -> (i32, i32) {
    %c0_i32 = arith.constant 0 : i32
    %c0_i32_0 = arith.constant 0 : i32
    %c0_i32_1 = arith.constant 0 : i32
    return %c0_i32, %c0_i32_0 : i32, i32
  }
  func.func @transform_7(%arg0: i32) -> (i32, i32) {
    %c0_i32 = arith.constant 0 : i32
    %c0_i32_0 = arith.constant 0 : i32
    %c0_i32_1 = arith.constant 0 : i32
    return %c0_i32, %c0_i32_0 : i32, i32
  }
  func.func @transform_8(%arg0: i32) -> (i32, i32) {
    %c0_i32 = arith.constant 0 : i32
    %c0_i32_0 = arith.constant 0 : i32
    return %c0_i32, %arg0 : i32, i32
  }
}

</mosaic_0001>

<llo_original>
// kernel: tpu_custom_call.1
$region0: #{tpu_custom_call.1}
  #allocation0 [shape = 'u32[]', space=smem, size = 0x4, offset = 0x4, fixed_abs, tag = 'smem constant byte address 0x4 - core index']
  #allocation1 [shape = 'u32[144,128]{1,0:T(1,128)}', space=vmem, size = 0x12000, scoped, tag = 'internal scratch']
  #allocation2 [shape = 'f32[1,1]{1,0:T(1,128)S(1)}', space=vmem, size = 0x200, scoped, tag = 'scoped memory for tpu_custom_call.1']
  %s0 = inlined_call_operand.vmem [shape: f32[8,28], index: 0, kind: input, shape index: {}]
  %s1 = inlined_call_operand.vmem [shape: f32[28,16], index: 1, kind: input, shape index: {}]
  %s2 = inlined_call_operand.vmem [shape: f32[1,16], index: 2, kind: input, shape index: {}]
  %s3 = inlined_call_operand.vmem [shape: f32[16,16], index: 3, kind: input, shape index: {}]
  %s4 = inlined_call_operand.vmem [shape: f32[28,16], index: 4, kind: input, shape index: {}]
  %s5 = inlined_call_operand.vmem [shape: f32[1,16], index: 5, kind: input, shape index: {}]
  %s6 = inlined_call_operand.vmem [shape: f32[1,16], index: 6, kind: input, shape index: {}]
  %s7 = inlined_call_operand.<no memory space> [shape: f32[1,1], index: 7, kind: input, shape index: {}]
  %s8 = inlined_call_operand.hbm [shape: f32[1,8], index: 8, kind: output, shape index: {}]
  %s9 = sld [smem:[#allocation0]]
  $region42: #{tpu_custom_call.1} parent=0
    _
  %s11 = ssub.s32 1, %s9
  %s12 = scalar_select 0, %s11, %s9
  %v13 = vstv %s7
  %14 = vst [vmem:[#allocation2] sm:$0x1] %v13
  $region1: #{tpu_custom_call.1} parent=0
    #allocation3 [shape = 'u8[512]{0}', space=vmem, size = 0x400, scoped, tag = 'output window, operand 0, single buffered']
    #allocation4 [shape = 's32[1]{0}', space=sflag, size = 0x4, scoped, tag = 'scoped memory for tpu_custom_call.1']
    %15 = vsyncpa [#allocation4], 0
    // Predicated region
    $region2: #{tpu_custom_call.1} parent=1 // pred_check
      _
    $region3: #{tpu_custom_call.1} parent=1 // pred_check_branch
      %17 = sbr.rel (0) target = $region5
    $region4: #{tpu_custom_call.1} parent=1 // pred_region
      _
    $region5: #{tpu_custom_call.1} parent=1 // pred_fallthru
      _
    // Predicated region
    $region6: #{tpu_custom_call.1} parent=1 // pred_check
      _
    $region7: #{tpu_custom_call.1} parent=1 // pred_check_branch
      %19 = sbr.rel (0) target = $region9
    $region8: #{tpu_custom_call.1} parent=1 // pred_region
      _
    $region9: #{tpu_custom_call.1} parent=1 // pred_fallthru
      _
    // Predicated region
    $region10: #{tpu_custom_call.1} parent=1 // pred_check
      _
    $region11: #{tpu_custom_call.1} parent=1 // pred_check_branch
      %21 = sbr.rel (0) target = $region13
    $region12: #{tpu_custom_call.1} parent=1 // pred_region
      _
    $region13: #{tpu_custom_call.1} parent=1 // pred_fallthru
      _
    // Predicated region
    $region14: #{tpu_custom_call.1} parent=1 // pred_check
      _
    $region15: #{tpu_custom_call.1} parent=1 // pred_check_branch
      %23 = sbr.rel (0) target = $region17
    $region16: #{tpu_custom_call.1} parent=1 // pred_region
      _
    $region17: #{tpu_custom_call.1} parent=1 // pred_fallthru
      _
    // Predicated region
    $region18: #{tpu_custom_call.1} parent=1 // pred_check
      _
    $region19: #{tpu_custom_call.1} parent=1 // pred_check_branch
      %25 = sbr.rel (0) target = $region21
    $region20: #{tpu_custom_call.1} parent=1 // pred_region
      _
    $region21: #{tpu_custom_call.1} parent=1 // pred_fallthru
      _
    // Predicated region
    $region22: #{tpu_custom_call.1} parent=1 // pred_check
      _
    $region23: #{tpu_custom_call.1} parent=1 // pred_check_branch
      %27 = sbr.rel (0) target = $region25
    $region24: #{tpu_custom_call.1} parent=1 // pred_region
      _
    $region25: #{tpu_custom_call.1} parent=1 // pred_fallthru
      _
    // Predicated region
    $region26: #{tpu_custom_call.1} parent=1 // pred_check
      _
    $region27: #{tpu_custom_call.1} parent=1 // pred_check_branch
      %29 = sbr.rel (0) target = $region29
    $region28: #{tpu_custom_call.1} parent=1 // pred_region
      _
    $region29: #{tpu_custom_call.1} parent=1 // pred_fallthru
      _
    // Predicated region
    $region30: #{tpu_custom_call.1} parent=1 // pred_check
      _
    $region31: #{tpu_custom_call.1} parent=1 // pred_check_branch
      %31 = sbr.rel (0) target = $region33
    $region32: #{tpu_custom_call.1} parent=1 // pred_region
      _
    $region33: #{tpu_custom_call.1} parent=1 // pred_fallthru
      _
    %v32 = vld [vmem:[%s0] sm:$0xff]
    %v33 = vld [vmem:[%s1] sm:$0xff]
    %v34 = vld [vmem:[%s1 + $0x8] sm:$0xff]
    %v35 = vld [vmem:[%s1 + $0x10] sm:$0xff]
    %v36 = vld [vmem:[%s1 + $0x18] sm:$0xf]
    %v37 = vld [vmem:[%s2] sm:$0x1]
    %v39 = vlaneseq
    %v40 = vshrl.u32 %v39, 7
    %v41 = vsub.s32 0, %v40
    %v42 = vrot.slane %v37, %v41
    %vm44 = vcmask 228352
    %v46 = vsel %vm44, %v32, 0
    %vm48 = vcmask 1043456
    %v50 = vsel %vm48, %v36, 0
    %52 = vmatprep.subr.mxu0 0.0
    %53 = vmatpush1.msra.mxu0 %v33
    %54 = vmatprep.subr.mxu0 0.0
    %55 = vmatpush1.msra.mxu0 %v34
    %56 = vmatprep.subr.mxu0 0.0
    %57 = vmatpush1.msra.mxu0 %v35
    %58 = vmatprep.subr.mxu0 0.0
    %59 = vmatpush1.msra.mxu0 %v50
    %60 = vmatprep.subr.mxu0 0.0
    %61 = vmatpush1.msra.mxu0 0.0
    %62 = vmatprep.subr.mxu0 0.0
    %63 = vmatpush1.msra.mxu0 0.0
    %64 = vmatprep.subr.mxu0 0.0
    %65 = vmatpush1.msra.mxu0 0.0
    %66 = vmatprep.subr.mxu0 0.0
    %67 = vmatpush1.msra.mxu0 0.0
    %68 = vmatprep.subr.mxu0 0.0
    %69 = vmatpush1.msra.mxu0 0.0
    %70 = vmatprep.subr.mxu0 0.0
    %71 = vmatpush1.msra.mxu0 0.0
    %72 = vmatprep.subr.mxu0 0.0
    %73 = vmatpush1.msra.mxu0 0.0
    %74 = vmatprep.subr.mxu0 0.0
    %75 = vmatpush1.msra.mxu0 0.0
    %76 = vmatprep.subr.mxu0 0.0
    %77 = vmatpush1.msra.mxu0 0.0
    %78 = vmatprep.subr.mxu0 0.0
    %79 = vmatpush1.msra.mxu0 0.0
    %80 = vmatprep.subr.mxu0 0.0
    %81 = vmatpush1.msra.mxu0 0.0
    %82 = vmatprep.subr.mxu0 0.0
    %83 = vmatpush1.msra.mxu0 0.0
    %84 = vmatprep.subr.mxu0 0.0
    %85 = vmatpush1.msra.mxu0 0.0
    %86 = vmatprep.subr.mxu0 0.0
    %87 = vmatpush1.msra.mxu0 0.0
    %88 = vmatprep.subr.mxu0 0.0
    %89 = vmatpush1.msra.mxu0 0.0
    %90 = vmatprep.subr.mxu0 0.0
    %91 = vmatpush1.msra.mxu0 0.0
    %92 = vmatprep.subr.mxu0 0.0
    %93 = vmatpush1.msra.mxu0 0.0
    %94 = vmatprep.subr.mxu0 0.0
    %95 = vmatpush1.msra.mxu0 0.0
    %96 = vmatprep.subr.mxu0 0.0
    %97 = vmatpush1.msra.mxu0 0.0
    %98 = vmatprep.subr.mxu0 0.0
    %99 = vmatpush1.msra.mxu0 0.0
    %100 = vmatprep.subr.mxu0 0.0
    %101 = vmatpush1.msra.mxu0 0.0
    %102 = vmatprep.subr.mxu0 0.0
    %103 = vmatpush1.msra.mxu0 0.0
    %104 = vmatprep.subr.mxu0 0.0
    %105 = vmatpush1.msra.mxu0 0.0
    %106 = vmatprep.subr.mxu0 0.0
    %107 = vmatpush1.msra.mxu0 0.0
    %108 = vmatprep.subr.mxu0 0.0
    %109 = vmatpush1.msra.mxu0 0.0
    %110 = vmatprep.subr.mxu0 0.0
    %111 = vmatpush1.msra.mxu0 0.0
    %112 = vmatprep.subr.mxu0 0.0
    %113 = vmatpush1.msra.mxu0 0.0
    %114 = vmatprep.subr.mxu0 0.0
    %115 = vmatpush1.msra.mxu0 0.0
    %116 = vmatprep.mubr.f32.mxu0 0.0
    %117 = vmatmul.mubr.f32.gmra.mrb[0].mxu0 %v46
    %v118 = vpop.f32.mrb[0].mxu0
    %v119 = vadd.f32 %v42, %v118
    %v120 = vpop.f32.mrb[0].mxu0
    %121 = vdwg.mxu0
    %v122 = vmax.f32 %v119, 0.0
    %v123 = vld [vmem:[%s3] sm:$0xff]
    %v124 = vld [vmem:[%s3 + $0x8] sm:$0xff]
    %v125 = vld [vmem:[%s4] sm:$0xff]
    %v126 = vld [vmem:[%s4 + $0x8] sm:$0xff]
    %v127 = vld [vmem:[%s4 + $0x10] sm:$0xff]
    %v128 = vld [vmem:[%s4 + $0x18] sm:$0xf]
    %v130 = vsel %vm48, %v128, 0
    %132 = vmatprep.subr.mxu0 0.0
    %133 = vmatpush1.msra.mxu0 %v125
    %134 = vmatprep.subr.mxu0 0.0
    %135 = vmatpush1.msra.mxu0 %v126
    %136 = vmatprep.subr.mxu0 0.0
    %137 = vmatpush1.msra.mxu0 %v127
    %138 = vmatprep.subr.mxu0 0.0
    %139 = vmatpush1.msra.mxu0 %v130
    %140 = vmatprep.subr.mxu0 0.0
    %141 = vmatpush1.msra.mxu0 0.0
    %142 = vmatprep.subr.mxu0 0.0
    %143 = vmatpush1.msra.mxu0 0.0
    %144 = vmatprep.subr.mxu0 0.0
    %145 = vmatpush1.msra.mxu0 0.0
    %146 = vmatprep.subr.mxu0 0.0
    %147 = vmatpush1.msra.mxu0 0.0
    %148 = vmatprep.subr.mxu0 0.0
    %149 = vmatpush1.msra.mxu0 0.0
    %150 = vmatprep.subr.mxu0 0.0
    %151 = vmatpush1.msra.mxu0 0.0
    %152 = vmatprep.subr.mxu0 0.0
    %153 = vmatpush1.msra.mxu0 0.0
    %154 = vmatprep.subr.mxu0 0.0
    %155 = vmatpush1.msra.mxu0 0.0
    %156 = vmatprep.subr.mxu0 0.0
    %157 = vmatpush1.msra.mxu0 0.0
    %158 = vmatprep.subr.mxu0 0.0
    %159 = vmatpush1.msra.mxu0 0.0
    %160 = vmatprep.subr.mxu0 0.0
    %161 = vmatpush1.msra.mxu0 0.0
    %162 = vmatprep.subr.mxu0 0.0
    %163 = vmatpush1.msra.mxu0 0.0
    %164 = vmatprep.subr.mxu0 0.0
    %165 = vmatpush1.msra.mxu0 0.0
    %166 = vmatprep.subr.mxu0 0.0
    %167 = vmatpush1.msra.mxu0 0.0
    %168 = vmatprep.subr.mxu0 0.0
    %169 = vmatpush1.msra.mxu0 0.0
    %170 = vmatprep.subr.mxu0 0.0
    %171 = vmatpush1.msra.mxu0 0.0
    %172 = vmatprep.subr.mxu0 0.0
    %173 = vmatpush1.msra.mxu0 0.0
    %174 = vmatprep.subr.mxu0 0.0
    %175 = vmatpush1.msra.mxu0 0.0
    %176 = vmatprep.subr.mxu0 0.0
    %177 = vmatpush1.msra.mxu0 0.0
    %178 = vmatprep.subr.mxu0 0.0
    %179 = vmatpush1.msra.mxu0 0.0
    %180 = vmatprep.subr.mxu0 0.0
    %181 = vmatpush1.msra.mxu0 0.0
    %182 = vmatprep.subr.mxu0 0.0
    %183 = vmatpush1.msra.mxu0 0.0
    %184 = vmatprep.subr.mxu0 0.0
    %185 = vmatpush1.msra.mxu0 0.0
    %186 = vmatprep.subr.mxu0 0.0
    %187 = vmatpush1.msra.mxu0 0.0
    %188 = vmatprep.subr.mxu0 0.0
    %189 = vmatpush1.msra.mxu0 0.0
    %190 = vmatprep.subr.mxu0 0.0
    %191 = vmatpush1.msra.mxu0 0.0
    %192 = vmatprep.subr.mxu0 0.0
    %193 = vmatpush1.msra.mxu0 0.0
    %194 = vmatprep.subr.mxu0 0.0
    %195 = vmatpush1.msra.mxu0 0.0
    %196 = vmatprep.mubr.f32.mxu0 0.0
    %197 = vmatmul.mubr.f32.gmra.mrb[0].mxu0 %v46
    %v198 = vpop.f32.mrb[0].mxu0
    %v199 = vadd.f32 0.0, %v198
    %v200 = vpop.f32.mrb[0].mxu0
    %201 = vdwg.mxu0
    %vm202 = vcmask 130048
    %v204 = vsel %vm202, %v122, 0
    %206 = vmatprep.subr.mxu0 0.0
    %207 = vmatpush1.msra.mxu0 %v123
    %208 = vmatprep.subr.mxu0 0.0
    %209 = vmatpush1.msra.mxu0 %v124
    %210 = vmatprep.subr.mxu0 0.0
    %211 = vmatpush1.msra.mxu0 0.0
    %212 = vmatprep.subr.mxu0 0.0
    %213 = vmatpush1.msra.mxu0 0.0
    %214 = vmatprep.subr.mxu0 0.0
    %215 = vmatpush1.msra.mxu0 0.0
    %216 = vmatprep.subr.mxu0 0.0
    %217 = vmatpush1.msra.mxu0 0.0
    %218 = vmatprep.subr.mxu0 0.0
    %219 = vmatpush1.msra.mxu0 0.0
    %220 = vmatprep.subr.mxu0 0.0
    %221 = vmatpush1.msra.mxu0 0.0
    %222 = vmatprep.subr.mxu0 0.0
    %223 = vmatpush1.msra.mxu0 0.0
    %224 = vmatprep.subr.mxu0 0.0
    %225 = vmatpush1.msra.mxu0 0.0
    %226 = vmatprep.subr.mxu0 0.0
    %227 = vmatpush1.msra.mxu0 0.0
    %228 = vmatprep.subr.mxu0 0.0
    %229 = vmatpush1.msra.mxu0 0.0
    %230 = vmatprep.subr.mxu0 0.0
    %231 = vmatpush1.msra.mxu0 0.0
    %232 = vmatprep.subr.mxu0 0.0
    %233 = vmatpush1.msra.mxu0 0.0
    %234 = vmatprep.subr.mxu0 0.0
    %235 = vmatpush1.msra.mxu0 0.0
    %236 = vmatprep.subr.mxu0 0.0
    %237 = vmatpush1.msra.mxu0 0.0
    %238 = vmatprep.subr.mxu0 0.0
    %239 = vmatpush1.msra.mxu0 0.0
    %240 = vmatprep.subr.mxu0 0.0
    %241 = vmatpush1.msra.mxu0 0.0
    %242 = vmatprep.subr.mxu0 0.0
    %243 = vmatpush1.msra.mxu0 0.0
    %244 = vmatprep.subr.mxu0 0.0
    %245 = vmatpush1.msra.mxu0 0.0
    %246 = vmatprep.subr.mxu0 0.0
    %247 = vmatpush1.msra.mxu0 0.0
    %248 = vmatprep.subr.mxu0 0.0
    %249 = vmatpush1.msra.mxu0 0.0
    %250 = vmatprep.subr.mxu0 0.0
    %251 = vmatpush1.msra.mxu0 0.0
    %252 = vmatprep.subr.mxu0 0.0
    %253 = vmatpush1.msra.mxu0 0.0
    %254 = vmatprep.subr.mxu0 0.0
    %255 = vmatpush1.msra.mxu0 0.0
    %256 = vmatprep.subr.mxu0 0.0
    %257 = vmatpush1.msra.mxu0 0.0
    %258 = vmatprep.subr.mxu0 0.0
    %259 = vmatpush1.msra.mxu0 0.0
    %260 = vmatprep.subr.mxu0 0.0
    %261 = vmatpush1.msra.mxu0 0.0
    %262 = vmatprep.subr.mxu0 0.0
    %263 = vmatpush1.msra.mxu0 0.0
    %264 = vmatprep.subr.mxu0 0.0
    %265 = vmatpush1.msra.mxu0 0.0
    %266 = vmatprep.subr.mxu0 0.0
    %267 = vmatpush1.msra.mxu0 0.0
    %268 = vmatprep.subr.mxu0 0.0
    %269 = vmatpush1.msra.mxu0 0.0
    %270 = vmatprep.mubr.f32.mxu0 0.0
    %271 = vmatmul.mubr.f32.gmra.mrb[0].mxu0 %v204
    %v272 = vpop.f32.mrb[0].mxu0
    %v273 = vadd.f32 %v199, %v272
    %v274 = vpop.f32.mrb[0].mxu0
    %275 = vdwg.mxu0
    %v276 = vld [vmem:[%s5] sm:$0x1]
    %v278 = vlaneseq
    %v279 = vshrl.u32 %v278, 7
    %v280 = vsub.s32 0, %v279
    %v281 = vrot.slane %v276, %v280
    %v283 = vadd.f32 %v273, %v281
    %v284 = vmax.f32 %v283, 0.0
    %v285 = vld [vmem:[%s6] sm:$0x1]
    %v286 = vld [vmem:[#allocation2] sm:$0x1]
    %288 = vset.pattern.permute.xlu0 0
    %289 = vperm.xlu0 %288, %v286
    %v290 = vpop.permute.xlu0 %289
    %v292 = vlaneseq
    %v293 = vshrl.u32 %v292, 7
    %v294 = vsub.s32 0, %v293
    %v295 = vrot.slane %v290, %v294
    %v297 = vsel %vm202, %v285, 0
    %v300 = vsel %vm202, %v284, 0
    %302 = vmatprep.subr.mxu0 0.0
    %303 = vmatpush1.xpose.msra.mxu0 %v300
    %304 = vmatprep.subr.mxu0 0.0
    %305 = vmatpush1.xpose.msra.mxu0 0.0
    %306 = vmatprep.subr.mxu0 0.0
    %307 = vmatpush1.xpose.msra.mxu0 0.0
    %308 = vmatprep.subr.mxu0 0.0
    %309 = vmatpush1.xpose.msra.mxu0 0.0
    %310 = vmatprep.subr.mxu0 0.0
    %311 = vmatpush1.xpose.msra.mxu0 0.0
    %312 = vmatprep.subr.mxu0 0.0
    %313 = vmatpush1.xpose.msra.mxu0 0.0
    %314 = vmatprep.subr.mxu0 0.0
    %315 = vmatpush1.xpose.msra.mxu0 0.0
    %316 = vmatprep.subr.mxu0 0.0
    %317 = vmatpush1.xpose.msra.mxu0 0.0
    %318 = vmatprep.subr.mxu0 0.0
    %319 = vmatpush1.xpose.msra.mxu0 0.0
    %320 = vmatprep.subr.mxu0 0.0
    %321 = vmatpush1.xpose.msra.mxu0 0.0
    %322 = vmatprep.subr.mxu0 0.0
    %323 = vmatpush1.xpose.msra.mxu0 0.0
    %324 = vmatprep.subr.mxu0 0.0
    %325 = vmatpush1.xpose.msra.mxu0 0.0
    %326 = vmatprep.subr.mxu0 0.0
    %327 = vmatpush1.xpose.msra.mxu0 0.0
    %328 = vmatprep.subr.mxu0 0.0
    %329 = vmatpush1.xpose.msra.mxu0 0.0
    %330 = vmatprep.subr.mxu0 0.0
    %331 = vmatpush1.xpose.msra.mxu0 0.0
    %332 = vmatprep.subr.mxu0 0.0
    %333 = vmatpush1.xpose.msra.mxu0 0.0
    %334 = vmatprep.subr.mxu0 0.0
    %335 = vmatpush1.xpose.msra.mxu0 0.0
    %336 = vmatprep.subr.mxu0 0.0
    %337 = vmatpush1.xpose.msra.mxu0 0.0
    %338 = vmatprep.subr.mxu0 0.0
    %339 = vmatpush1.xpose.msra.mxu0 0.0
    %340 = vmatprep.subr.mxu0 0.0
    %341 = vmatpush1.xpose.msra.mxu0 0.0
    %342 = vmatprep.subr.mxu0 0.0
    %343 = vmatpush1.xpose.msra.mxu0 0.0
    %344 = vmatprep.subr.mxu0 0.0
    %345 = vmatpush1.xpose.msra.mxu0 0.0
    %346 = vmatprep.subr.mxu0 0.0
    %347 = vmatpush1.xpose.msra.mxu0 0.0
    %348 = vmatprep.subr.mxu0 0.0
    %349 = vmatpush1.xpose.msra.mxu0 0.0
    %350 = vmatprep.subr.mxu0 0.0
    %351 = vmatpush1.xpose.msra.mxu0 0.0
    %352 = vmatprep.subr.mxu0 0.0
    %353 = vmatpush1.xpose.msra.mxu0 0.0
    %354 = vmatprep.subr.mxu0 0.0
    %355 = vmatpush1.xpose.msra.mxu0 0.0
    %356 = vmatprep.subr.mxu0 0.0
    %357 = vmatpush1.xpose.msra.mxu0 0.0
    %358 = vmatprep.subr.mxu0 0.0
    %359 = vmatpush1.xpose.msra.mxu0 0.0
    %360 = vmatprep.subr.mxu0 0.0
    %361 = vmatpush1.xpose.msra.mxu0 0.0
    %362 = vmatprep.subr.mxu0 0.0
    %363 = vmatpush1.xpose.msra.mxu0 0.0
    %364 = vmatprep.subr.mxu0 0.0
    %365 = vmatpush1.xpose.msra.mxu0 0.0
    %366 = vmatprep.mubr.f32.mxu0 0.0
    %367 = vmatmul.mubr.f32.gmra.mrb[0].mxu0 %v297
    %v368 = vpop.f32.mrb[0].mxu0
    %v369 = vadd.f32 %v295, %v368
    %v370 = vpop.f32.mrb[0].mxu0
    %371 = vdwg.mxu0
    %vm372 = vcmask 57344
    %373 = vst.msk [vmem:[#allocation3] sm:$0x1] %vm372, %v369
    // Predicated region
    $region34: #{tpu_custom_call.1} parent=1 // pred_check
      _
    $region35: #{tpu_custom_call.1} parent=1 // pred_check_branch
      %375 = sbr.rel (0) target = $region37
    $region36: #{tpu_custom_call.1} parent=1 // pred_region
      %s377 = ssub.s32 16, 16
      %378 = vsyncadd [#allocation4], %s377
      %s380 = sshll.u32 [#allocation3], 4
      %s381 = int_to_ptr.vmem [resolvable:$true] %s380
      %383 = dma.vmem_to_hbm [thread:$0]  %s381, 16, %s8, [#allocation4]
    $region37: #{tpu_custom_call.1} parent=1 // pred_fallthru
      _
    // Predicated region
    $region38: #{tpu_custom_call.1} parent=1 // pred_check
      _
    $region39: #{tpu_custom_call.1} parent=1 // pred_check_branch
      %385 = sbr.rel (0) target = $region41
    $region40: #{tpu_custom_call.1} parent=1 // pred_region
      %386 = dma.done [#allocation4], 16
    $region41: #{tpu_custom_call.1} parent=1 // pred_fallthru
      _
    %387 = vsyncpa [#allocation4], 1

</llo_original>
